<compile_context>
chip_gen: v5e
topology: v5e:2x2
jax: 0.10.0
libtpu: 0.0.40
codegen_flags: <defaults>
</compile_context>

<pallas_src>
import jax
import jax.numpy as jnp
import numpy as np
from jax.experimental import pallas as pl
from jax.experimental.pallas import tpu as pltpu

DEFAULT_TILE_N = 8192


# ----------------------------- Pallas kernel ------------------------------- #

def _score_kernel(w_ref, et_ref, out_ref):
    """scores tile: (B, d_e) @ (d_e, TN) -> (B, TN); one MXU op + one full store."""
    out_ref[...] = jnp.dot(w_ref[...], et_ref[...],
                           preferred_element_type=jnp.float32)


def _round_up(x, m):
    return ((x + m - 1) // m) * m


def _choose_tile(n_pad, tile_target):
    """Pick a candidate tile (multiple of 128) that divides n_pad.

    Prefers the largest tile <= tile_target whose grid count is even and >= 2, so the
    "parallel" candidate axis splits evenly across v7x's 2 TensorCores; falls back to
    the largest divisor tile otherwise (single-core chips / awkward n_pad)."""
    assert n_pad % 128 == 0
    tile_target = max(128, _round_up(int(tile_target), 128))
    m = n_pad // 128                       # number of 128-lane blocks
    t_cap = max(1, min(m, tile_target // 128))
    best_any = None
    for t in range(t_cap, 0, -1):
        if m % t:
            continue
        if best_any is None:
            best_any = t
        g = m // t
        if g >= 2 and g % 2 == 0:          # even grid: both TCs get equal work
            return t * 128
    return best_any * 128


def prepare_candidate_table(e_weight, dtype=jnp.bfloat16):
    """One-time prep of the candidate stream (do NOT call per forward).

    Returns a lane-dense (d_e, N_pad) transposed entity table, padded to a multiple of
    128 candidates and cast to bf16 (halves the only HBM traffic that matters)."""
    num_entities, d_e = e_weight.shape
    n_pad = _round_up(num_entities, 128)
    e_t = jnp.asarray(e_weight, jnp.float32).T.astype(dtype)
    if n_pad != num_entities:
        e_t = jnp.pad(e_t, ((0, 0), (0, n_pad - num_entities)))
    return e_t


def ht_scores_pallas(w_bn, e_t_padded, *, tile_n=DEFAULT_TILE_N):
    """scores[b, n] = sum_k w_bn[b, k] * E[n, k], streamed over the prepped table."""
    d_e, n_pad = e_t_padded.shape
    B, d_e2 = w_bn.shape
    assert d_e == d_e2 and n_pad % 128 == 0
    tile = _choose_tile(n_pad, tile_n)
    itemsize = e_t_padded.dtype.itemsize
    cost = pl.CostEstimate(
        flops=2 * B * d_e * n_pad,
        transcendentals=0,
        bytes_accessed=n_pad * d_e * itemsize + B * d_e * itemsize + B * n_pad * 4,
    )
    scores = pl.pallas_call(
        _score_kernel,
        out_shape=jax.ShapeDtypeStruct((B, n_pad), jnp.float32),
        grid=(n_pad // tile,),
        in_specs=[
            pl.BlockSpec((B, d_e), lambda n: (0, 0)),     # folded weights: tiny, resident
            pl.BlockSpec((d_e, tile), lambda n: (0, n)),  # candidate tile (lane-dense)
        ],
        out_specs=pl.BlockSpec((B, tile), lambda n: (0, n)),
        compiler_params=pltpu.CompilerParams(dimension_semantics=("parallel",)),
        cost_estimate=cost,
    )(w_bn.astype(e_t_padded.dtype), e_t_padded)
    return scores                                          # (B, n_pad); caller slices


# --------------------------------- JAX glue --------------------------------- #

def batchnorm_eval(x, gamma, beta, mean, var, eps=1e-5):
    # torch BatchNorm1d (eval): (x - running_mean) / sqrt(running_var + eps) * w + b
    return (x - mean) / jnp.sqrt(var + eps) * gamma + beta


def compute_W_out(e_emb, ht_left, ht_right, ht_internal, ht_root, r_emb,
                  miss_ent_domain):
    """Exact factored evaluation of the PyTorch einsum chain (no d_e^4 tensor)."""
    rc = jnp.einsum('bd,dc->bc', r_emb, ht_root)                       # (B, r)
    if miss_ent_domain == 1:
        e2, e3, e4 = e_emb
        lv = jnp.einsum('aij,bj->bai', ht_left, e2)                    # (B, r, d_e)
        rv = jnp.einsum('pkl,bk,bl->bp', ht_right, e3, e4)             # (B, r)
        q = jnp.einsum('bc,cap,bp->ba', rc, ht_internal, rv)           # (B, r)
        return jnp.einsum('ba,bai->bi', q, lv)                         # (B, d_e)
    if miss_ent_domain == 2:
        e1, e3, e4 = e_emb
        lv = jnp.einsum('aij,bi->baj', ht_left, e1)
        rv = jnp.einsum('pkl,bk,bl->bp', ht_right, e3, e4)
        q = jnp.einsum('bc,cap,bp->ba', rc, ht_internal, rv)
        return jnp.einsum('ba,baj->bj', q, lv)
    if miss_ent_domain == 3:
        e1, e2, e4 = e_emb
        lv = jnp.einsum('aij,bi,bj->ba', ht_left, e1, e2)
        rv = jnp.einsum('pkl,bl->bpk', ht_right, e4)
        q = jnp.einsum('bc,cap,ba->bp', rc, ht_internal, lv)
        return jnp.einsum('bp,bpk->bk', q, rv)
    if miss_ent_domain == 4:
        e1, e2, e3 = e_emb
        lv = jnp.einsum('aij,bi,bj->ba', ht_left, e1, e2)
        rv = jnp.einsum('pkl,bk->bpl', ht_right, e3)
        q = jnp.einsum('bc,cap,ba->bp', rc, ht_internal, lv)
        return jnp.einsum('bp,bpl->bl', q, rv)
    raise ValueError(f'miss_ent_domain {miss_ent_domain} not supported')


def ht_forward(params, cand_table, r_idx, e_idx_list, miss_ent_domain, num_entities):
    E_w, R_w = params['E'], params['R']
    # TODO(synk): training-mode BatchNorm (batch statistics) and dropout noise are not
    # modelled; eval-mode semantics (running stats, identity dropout) are used.
    r_emb = batchnorm_eval(R_w[r_idx], **params['bnr'])
    e_emb = [batchnorm_eval(E_w[idx], **params['bne']) for idx in e_idx_list]
    W_out = compute_W_out(e_emb, params['ht_left'], params['ht_right'],
                          params['ht_internal'], params['ht_root'],
                          r_emb, miss_ent_domain)
    W_out = batchnorm_eval(W_out, **params['bnw'])        # bnw; hidden_dropout = identity
    scores = ht_scores_pallas(W_out, cand_table)          # candidates use the RAW E table
    scores = scores[:, :num_entities]                     # drop pad cols BEFORE softmax
    pred = jax.nn.softmax(scores, axis=1)                 # tiny (B, N) op; XLA fuses it
    return pred, scores


# ----------------------- literal PyTorch reference path ---------------------- #

def build_W(ht_internal, ht_left, ht_right, ht_root):
    W_int = jnp.einsum('cab,aij,bkl->cijkl', ht_internal, ht_left, ht_right)
    return jnp.einsum('dc,cijkl->dijkl', ht_root, W_int)


def reference_scores(params, r_idx, e_idx_list, miss_ent_domain):
    """Direct transcription of the PyTorch forward (builds the full 5-D W), in f32."""
    E_w, R_w = params['E'], params['R']
    B = r_idx.shape[0]
    d_e = E_w.shape[1]
    d_r = R_w.shape[1]
    W = build_W(params['ht_internal'], params['ht_left'],
                params['ht_right'], params['ht_root'])
    r_emb = batchnorm_eval(R_w[r_idx], **params['bnr'])
    W_mat = (r_emb @ W.reshape(d_r, -1)).reshape(B, d_e, d_e, d_e, d_e)
    e = [batchnorm_eval(E_w[idx], **params['bne']) for idx in e_idx_list]
    if miss_ent_domain == 1:
        W_out = jnp.einsum('bijkl,bj,bk,bl->bi', W_mat, *e)
    elif miss_ent_domain == 2:
        W_out = jnp.einsum('bijkl,bi,bk,bl->bj', W_mat, *e)
    elif miss_ent_domain == 3:
        W_out = jnp.einsum('bijkl,bi,bj,bl->bk', W_mat, *e)
    else:
        W_out = jnp.einsum('bijkl,bi,bj,bk->bl', W_mat, *e)
    W_out = batchnorm_eval(W_out, **params['bnw'])
    return W_out @ E_w.T


# ----------------------------------- main ----------------------------------- #

if __name__ == "__main__":
    B = 2
    d_e = 16
    d_r = 8
    rank = 8
    num_entities = 5000        # deliberately NOT a multiple of 128 (exercises padding)
    num_relations = 11

    key = jax.random.PRNGKey(0)
    ks = jax.random.split(key, 16)

    def bn_params(k, dim):
        k1, k2, k3, k4 = jax.random.split(k, 4)
        return dict(
            gamma=1.0 + 0.1 * jax.random.normal(k1, (dim,), jnp.float32),
            beta=0.05 * jax.random.normal(k2, (dim,), jnp.float32),
            mean=0.001 * jax.random.normal(k3, (dim,), jnp.float32),
            var=1.0 + 0.1 * jnp.abs(jax.random.normal(k4, (dim,), jnp.float32)),
        )

    params = dict(
        E=0.001 * jax.random.normal(ks[0], (num_entities, d_e), jnp.float32),
        R=0.001 * jax.random.normal(ks[1], (num_relations, d_r), jnp.float32),
        ht_left=0.1 * jax.random.normal(ks[2], (rank, d_e, d_e), jnp.float32),
        ht_right=0.1 * jax.random.normal(ks[3], (rank, d_e, d_e), jnp.float32),
        ht_internal=0.1 * jax.random.normal(ks[4], (rank, rank, rank), jnp.float32),
        ht_root=0.1 * jax.random.normal(ks[5], (d_r, rank), jnp.float32),
        bne=bn_params(ks[6], d_e),
        bnr=bn_params(ks[7], d_r),
        bnw=bn_params(ks[8], d_e),
    )

    r_idx = jax.random.randint(ks[9], (B,), 1, num_relations)
    e_idx_list = [jax.random.randint(ks[10 + i], (B,), 1, num_entities)
                  for i in range(3)]

    # One-time candidate-table prep (lane-dense, 128-padded, bf16) — NOT per call.
    cand_table = jax.block_until_ready(prepare_candidate_table(params['E']))

    fwd = jax.jit(ht_forward, static_argnums=(4, 5))

    for med in (1, 2, 3, 4):
        pred, scores = fwd(params, cand_table, r_idx, e_idx_list, med, num_entities)
        pred = jax.block_until_ready(pred)
        scores = jax.block_until_ready(scores)
        assert pred.shape == (B, num_entities)
        assert scores.shape == (B, num_entities)

        scores_ref = reference_scores(params, r_idx, e_idx_list, med)
        pred_ref = jax.nn.softmax(scores_ref, axis=1)
        scale = float(jnp.max(jnp.abs(scores_ref))) + 1e-30
        err = float(jnp.max(jnp.abs(scores - scores_ref)))
        # bf16 candidate stream + bf16 folded weights (f32 accumulation): tolerance 2e-2.
        assert err / scale < 2e-2, \
            f"miss_ent_domain={med}: score rel err {err / scale}"
        np.testing.assert_allclose(np.asarray(pred), np.asarray(pred_ref), atol=1e-5)

    print("KERNEL_OK")
</pallas_src>

<mosaic_0001>
module attributes {stable_mosaic.version = 11 : i64} {
  func.func @_score_kernel(%arg0: i32, %arg1: memref<2x16xbf16, #tpu.memory_space<vmem>>, %arg2: memref<16x2560xbf16, #tpu.memory_space<vmem>>, %arg3: memref<2x2560xf32, #tpu.memory_space<vmem>>) attributes {dimension_semantics = [#tpu.dimension_semantics<parallel>], iteration_bounds = array<i64: 2>, scalar_prefetch = 0 : i64, scratch_operands = 0 : i64, tpu.core_type = #tpu.core_type<tc>, window_params = [{pipeline_mode = #tpu.pipeline_mode<synchronous>, transform_indices = @transform_0, window_bounds = array<i64: 2, 16>}, {transform_indices = @transform_1, window_bounds = array<i64: 16, 2560>}, {transform_indices = @transform_2, window_bounds = array<i64: 2, 2560>}]} {
    %c0 = arith.constant 0 : index
    %c0_0 = arith.constant 0 : index
    %0 = vector.load %arg1[%c0, %c0_0] : memref<2x16xbf16, #tpu.memory_space<vmem>>, vector<2x16xbf16>
    %c0_1 = arith.constant 0 : index
    %c0_2 = arith.constant 0 : index
    %1 = vector.load %arg2[%c0_1, %c0_2] : memref<16x2560xbf16, #tpu.memory_space<vmem>>, vector<16x2560xbf16>
    %cst = arith.constant dense<0.000000e+00> : vector<2x2560xf32>
    %2 = tpu.matmul %0, %1, %cst {dimension_numbers = #tpu.dot_dimension_numbers<[1], [0], [0], [1], [0, 0, 1, 1], [], []>} : vector<2x16xbf16>, vector<16x2560xbf16>, vector<2x2560xf32> -> vector<2x2560xf32>
    %c0_3 = arith.constant 0 : index
    %c0_4 = arith.constant 0 : index
    %3 = vector.load %arg3[%c0_3, %c0_4] : memref<2x2560xf32, #tpu.memory_space<vmem>>, vector<2x2560xf32>
    tpu.vector_store %arg3[%c0_3, %c0_4], %2 {strides = array<i32>} : memref<2x2560xf32, #tpu.memory_space<vmem>>, vector<2x2560xf32>,
    return
  }
  func.func @transform_0(%arg0: i32) -> (i32, i32) {
    %c0_i32 = arith.constant 0 : i32
    %c0_i32_0 = arith.constant 0 : i32
    %c0_i32_1 = arith.constant 0 : i32
    return %c0_i32, %c0_i32_0 : i32, i32
  }
  func.func @transform_1(%arg0: i32) -> (i32, i32) {
    %c0_i32 = arith.constant 0 : i32
    %c0_i32_0 = arith.constant 0 : i32
    return %c0_i32, %arg0 : i32, i32
  }
  func.func @transform_2(%arg0: i32) -> (i32, i32) {
    %c0_i32 = arith.constant 0 : i32
    %c0_i32_0 = arith.constant 0 : i32
    return %c0_i32, %arg0 : i32, i32
  }
}

</mosaic_0001>

<llo_original>
// kernel: ht_forward.1
$region0: #{ht_forward.1}
  #allocation0 [shape = 'u32[]', space=smem, size = 0x4, offset = 0x4, fixed_abs, tag = 'smem constant byte address 0x4 - core index']
  #allocation1 [shape = 'u32[72,128]{1,0:T(1,128)}', space=vmem, size = 0x9000, scoped, tag = 'internal scratch']
  %s0 = inlined_call_operand.vmem [shape: bf16[2,16], index: 0, kind: input, shape index: {}]
  %s1 = inlined_call_operand.vmem [shape: bf16[16,5120], index: 1, kind: input, shape index: {}]
  %s2 = inlined_call_operand.vmem [shape: f32[2,5120], index: 2, kind: output, shape index: {}]
  %s3 = sld [smem:[#allocation0]]
  $region64: #{ht_forward.1} parent=0
    _
  %s5 = ssub.s32 1, %s3
  %s6 = scalar_select 0, %s5, %s3
  $region1: #{ht_forward.1} parent=0
    #allocation2 [shape = 'u8[163840]{0}', space=vmem, size = 0x28000, scoped, tag = 'input window, operand 1']
    loop: start=0, step=1, limit=4
    $region2: #{ht_forward.1} parent=1 // loop_pre_header
      _
    $region3: #{ht_forward.1} parent=1 // loop_header
      %s8 = sphi 0, %s12
      %p9 = scmp.ge.s32.totalorder %s8, 4
      %s16 = sphi 0, %s16
      %s18 = sphi 0, %s16
      %s19 = sphi 0, %s18
      %s33 = sphi 0, %s19
      %s39 = sphi 0, %s41
      %s42 = sphi 0, %s39
      %s43 = sphi 0, %s42
      %s59 = sphi 0, %s43
      %s65 = sphi 0, %s67
      %s68 = sphi 0, %s65
      %s69 = sphi 0, %s68
      %s85 = sphi 0, %s69
    $region4: #{ht_forward.1} parent=1 // loop_header_branch
      %11 = sbr.rel (%p9) target = $region8
    $region5: #{ht_forward.1} parent=1 // loop_body
      %s13 = ssub.s32 %s8, 1
      %s14 = ssub.s32 %s8, 2
      %s15 = sadd.s32 %s8, 1
      %s17 = sadd.s32 %s16, 1
      %p20 = scmp.eq.s32.totalorder %s8, 1
      %p21 = scmp.ne.s32.totalorder %s16, %s18
      %p22 = scmp.eq.s32.totalorder %s8, 0
      %p23 = por %p21, %p22
      %p24 = scmp.ne.s32.totalorder %s16, %s18
      %p25 = scmp.eq.s32.totalorder %s13, 1
      %p26 = por %p24, %p25
      %p27 = scmp.ne.s32.totalorder %s18, %s19
      %p28 = scmp.eq.s32.totalorder %s13, 0
      %p29 = por %p27, %p28
      %p30 = scmp.ne.s32.totalorder %s18, %s19
      %p31 = scmp.eq.s32.totalorder %s14, 1
      %p32 = por %p30, %p31
      %p34 = scmp.ne.s32.totalorder %s19, %s33
      %p35 = scmp.eq.s32.totalorder %s14, 0
      %p36 = por %p34, %p35
      %s37 = ssub.s32 %s8, %s15
      %p38 = scmp.eq.s32.totalorder %s37, 0
      %s40 = sadd.s32 %s39, 1
      %s41 = scalar_select %p38, %s39, %s40
      %p44 = pneg %p38
      %p45 = scmp.eq.s32.totalorder %s8, 1
      %p46 = por %p44, %p45
      %p47 = scmp.ne.s32.totalorder %s39, %s42
      %p48 = scmp.eq.s32.totalorder %s8, 0
      %p49 = por %p47, %p48
      %p50 = scmp.ne.s32.totalorder %s39, %s42
      %p51 = scmp.eq.s32.totalorder %s13, 1
      %p52 = por %p50, %p51
      %p53 = scmp.ne.s32.totalorder %s42, %s43
      %p54 = scmp.eq.s32.totalorder %s13, 0
      %p55 = por %p53, %p54
      %p56 = scmp.ne.s32.totalorder %s42, %s43
      %p57 = scmp.eq.s32.totalorder %s14, 1
      %p58 = por %p56, %p57
      %p60 = scmp.ne.s32.totalorder %s43, %s59
      %p61 = scmp.eq.s32.totalorder %s14, 0
      %p62 = por %p60, %p61
      %s63 = ssub.s32 %s8, %s15
      %p64 = scmp.eq.s32.totalorder %s63, 0
      %s66 = sadd.s32 %s65, 1
      %s67 = scalar_select %p64, %s65, %s66
      %p70 = pneg %p64
      %p71 = scmp.eq.s32.totalorder %s8, 1
      %p72 = por %p70, %p71
      %p73 = scmp.ne.s32.totalorder %s65, %s68
      %p74 = scmp.eq.s32.totalorder %s8, 0
      %p75 = por %p73, %p74
      %p76 = scmp.ne.s32.totalorder %s65, %s68
      %p77 = scmp.eq.s32.totalorder %s13, 1
      %p78 = por %p76, %p77
      %p79 = scmp.ne.s32.totalorder %s68, %s69
      %p80 = scmp.eq.s32.totalorder %s13, 0
      %p81 = por %p79, %p80
      %p82 = scmp.ne.s32.totalorder %s68, %s69
      %p83 = scmp.eq.s32.totalorder %s14, 1
      %p84 = por %p82, %p83
      %p86 = scmp.ne.s32.totalorder %s69, %s85
      %p87 = scmp.eq.s32.totalorder %s14, 0
      %p88 = por %p86, %p87
      %p89 = scmp.le.s32.totalorder 1, %s8
      %p90 = scmp.lt.s32.totalorder %s8, 3
      %p91 = pnand %p89, %p90
      %p92 = pneg %p91
      // Predicated region
      $region9: #{ht_forward.1} parent=5 // pred_check
        _
      $region10: #{ht_forward.1} parent=5 // pred_check_branch
        %94 = sbr.rel (%p91) target = $region12
      $region11: #{ht_forward.1} parent=5 // pred_region
        %s95 = ssub.s32 %s8, 1
        // Predicated region
        $region13: #{ht_forward.1} parent=11 // pred_check
          %p96 = pneg %p29
        $region14: #{ht_forward.1} parent=11 // pred_check_branch
          %98 = sbr.rel (%p96) target = $region16
        $region15: #{ht_forward.1} parent=11 // pred_region
          _
        $region16: #{ht_forward.1} parent=11 // pred_fallthru
          _
      $region12: #{ht_forward.1} parent=5 // pred_fallthru
        _
      %p99 = scmp.lt.s32.totalorder %s8, 2
      // Predicated region
      $region17: #{ht_forward.1} parent=5 // pred_check
        %p100 = pneg %p99
      $region18: #{ht_forward.1} parent=5 // pred_check_branch
        %102 = sbr.rel (%p100) target = $region20
      $region19: #{ht_forward.1} parent=5 // pred_region
        // Predicated region
        $region21: #{ht_forward.1} parent=19 // pred_check
          %p103 = pneg %p49
        $region22: #{ht_forward.1} parent=19 // pred_check_branch
          %105 = sbr.rel (%p103) target = $region24
        $region23: #{ht_forward.1} parent=19 // pred_region
          %s106 = sand.u32 %s39, 1
          %s107 = sand.u32 %s39, 1
          %s108 = smul.addr %s107, 160
          %s109 = scalar_lea.vmem [#allocation2], %s108
          %s110 = smul.u32 20, %s8
          %s111 = smul.addr %s110, 4
          %s112 = scalar_lea.vmem %s1, %s111
          // Predicated region
          $region25: #{ht_forward.1} parent=23 // pred_check
            _
          $region26: #{ht_forward.1} parent=23 // pred_check_branch
            %114 = sbr.rel (0) target = $region28
          $region27: #{ht_forward.1} parent=23 // pred_region
            // Predicated region
            $region29: #{ht_forward.1} parent=27 // pred_check
              _
            $region30: #{ht_forward.1} parent=27 // pred_check_branch
              %116 = sbr.rel (0) target = $region32
            $region31: #{ht_forward.1} parent=27 // pred_region
              loop: start=0, step=1, limit=1
              $region33: #{ht_forward.1} parent=31 // loop_pre_header
                _
              $region34: #{ht_forward.1} parent=31 // loop_header
                %s118 = sphi 0, %s122
                %p119 = scmp.ge.s32.totalorder %s118, 1
                %s123 = sphi %s112, %s112
                %s124 = sphi %s109, %s109
              $region35: #{ht_forward.1} parent=31 // loop_header_branch
                %121 = sbr.rel (%p119) target = $region39
              $region36: #{ht_forward.1} parent=31 // loop_body
                %v125 = vld [vmem:[%s123] sm:$0xff]
                %126 = vst [vmem:[%s124] sm:$0xff] %v125
                %v127 = vld [vmem:[%s123 + $0x8] sm:$0xff]
                %128 = vst [vmem:[%s124 + $0x8] sm:$0xff] %v127
                %v129 = vld [vmem:[%s123 + $0x10] sm:$0xff]
                %130 = vst [vmem:[%s124 + $0x10] sm:$0xff] %v129
                %v131 = vld [vmem:[%s123 + $0x18] sm:$0xff]
                %132 = vst [vmem:[%s124 + $0x18] sm:$0xff] %v131
                %v133 = vld [vmem:[%s123 + $0x20] sm:$0xff]
                %134 = vst [vmem:[%s124 + $0x20] sm:$0xff] %v133
                %v135 = vld [vmem:[%s123 + $0x28] sm:$0xff]
                %136 = vst [vmem:[%s124 + $0x28] sm:$0xff] %v135
                %v137 = vld [vmem:[%s123 + $0x30] sm:$0xff]
                %138 = vst [vmem:[%s124 + $0x30] sm:$0xff] %v137
                %v139 = vld [vmem:[%s123 + $0x38] sm:$0xff]
                %140 = vst [vmem:[%s124 + $0x38] sm:$0xff] %v139
                %v141 = vld [vmem:[%s123 + $0x40] sm:$0xff]
                %142 = vst [vmem:[%s124 + $0x40] sm:$0xff] %v141
                %v143 = vld [vmem:[%s123 + $0x48] sm:$0xff]
                %144 = vst [vmem:[%s124 + $0x48] sm:$0xff] %v143
                %v145 = vld [vmem:[%s123 + $0xa0] sm:$0xff]
                %146 = vst [vmem:[%s124 + $0x50] sm:$0xff] %v145
                %v147 = vld [vmem:[%s123 + $0xa8] sm:$0xff]
                %148 = vst [vmem:[%s124 + $0x58] sm:$0xff] %v147
                %v149 = vld [vmem:[%s123 + $0xb0] sm:$0xff]
                %150 = vst [vmem:[%s124 + $0x60] sm:$0xff] %v149
                %v151 = vld [vmem:[%s123 + $0xb8] sm:$0xff]
                %152 = vst [vmem:[%s124 + $0x68] sm:$0xff] %v151
                %v153 = vld [vmem:[%s123 + $0xc0] sm:$0xff]
                %154 = vst [vmem:[%s124 + $0x70] sm:$0xff] %v153
                %v155 = vld [vmem:[%s123 + $0xc8] sm:$0xff]
                %156 = vst [vmem:[%s124 + $0x78] sm:$0xff] %v155
                %v157 = vld [vmem:[%s123 + $0xd0] sm:$0xff]
                %158 = vst [vmem:[%s124 + $0x80] sm:$0xff] %v157
                %v159 = vld [vmem:[%s123 + $0xd8] sm:$0xff]
                %160 = vst [vmem:[%s124 + $0x88] sm:$0xff] %v159
                %v161 = vld [vmem:[%s123 + $0xe0] sm:$0xff]
                %162 = vst [vmem:[%s124 + $0x90] sm:$0xff] %v161
                %v163 = vld [vmem:[%s123 + $0xe8] sm:$0xff]
                %164 = vst [vmem:[%s124 + $0x98] sm:$0xff] %v163
              $region37: #{ht_forward.1} parent=31 // loop_footer
                %s122 = sadd.s32 1, %s118
              $region38: #{ht_forward.1} parent=31 // loop_footer_branch
                %117 = sbr.rel target = $region34
              $region39: #{ht_forward.1} parent=31 // loop_exit
                _
            $region32: #{ht_forward.1} parent=27 // pred_fallthru
              _
            // Predicated region
            $region40: #{ht_forward.1} parent=27 // pred_check
              _
            $region41: #{ht_forward.1} parent=27 // pred_check_branch
              %166 = sbr.rel target = $region43
            $region42: #{ht_forward.1} parent=27 // pred_region
              _
            $region43: #{ht_forward.1} parent=27 // pred_fallthru
              _
          $region28: #{ht_forward.1} parent=23 // pred_fallthru
            _
          %167 = vnop
        $region24: #{ht_forward.1} parent=19 // pred_fallthru
          _
      $region20: #{ht_forward.1} parent=5 // pred_fallthru
        _
      %p168 = scmp.le.s32.totalorder 1, %s8
      %p169 = scmp.lt.s32.totalorder %s8, 3
      %p170 = pnand %p168, %p169
      %p171 = pneg %p170
      // Predicated region
      $region44: #{ht_forward.1} parent=5 // pred_check
        _
      $region45: #{ht_forward.1} parent=5 // pred_check_branch
        %173 = sbr.rel (%p170) target = $region47
      $region46: #{ht_forward.1} parent=5 // pred_region
        %s174 = ssub.s32 %s8, 1
        %s175 = sand.u32 %s42, 1
        %s176 = sand.u32 %s42, 1
        %s177 = smul.addr %s176, 160
        %s178 = scalar_lea.vmem [#allocation2], %s177
        // Predicated region
        $region48: #{ht_forward.1} parent=46 // pred_check
          %p179 = pneg %p55
        $region49: #{ht_forward.1} parent=46 // pred_check_branch
          %181 = sbr.rel (%p179) target = $region51
        $region50: #{ht_forward.1} parent=46 // pred_region
          _
        $region51: #{ht_forward.1} parent=46 // pred_fallthru
          _
        %p182 = pneg %p29
        %p183 = pneg %p26
        %s184 = sand.u32 %s42, 1
        %s185 = sand.u32 %s42, 1
        %s186 = smul.addr %s185, 160
        %s187 = scalar_lea.vmem [#allocation2], %s186
        %p188 = pneg %p55
        %p189 = pneg %p52
        %p190 = pneg %p81
        %p191 = pneg %p78
        %s192 = smul.u32 20, %s13
        %p193 = scmp.lt.s32.totalorder %s192, 39
        %s194 = scalar_select %p193, %s192, 39
        %s195 = smul.addr %s194, 2
        %s196 = scalar_lea.vmem %s2, %s195
        %s197 = smul.u32 20, %s13
        %s198 = smul.u32 20, %s13
        %p199 = scmp.lt.s32.totalorder %s198, 39
        %s200 = scalar_select %p199, %s198, 39
        %s201 = smul.addr %s200, 2
        %s202 = scalar_lea.vmem %s2, %s201
        %s203 = smul.u32 20, %s13
        %v205 = vld [vmem:[%s0] sm:$0x1]
        %v206 = vld [vmem:[%s178] sm:$0xff]
        %v207 = vld [vmem:[%s178 + $0x8] sm:$0xff]
        %v208 = vld [vmem:[%s178 + $0x10] sm:$0xff]
        %v209 = vld [vmem:[%s178 + $0x18] sm:$0xff]
        %v210 = vld [vmem:[%s178 + $0x20] sm:$0xff]
        %v211 = vld [vmem:[%s178 + $0x28] sm:$0xff]
        %v212 = vld [vmem:[%s178 + $0x30] sm:$0xff]
        %v213 = vld [vmem:[%s178 + $0x38] sm:$0xff]
        %v214 = vld [vmem:[%s178 + $0x40] sm:$0xff]
        %v215 = vld [vmem:[%s178 + $0x48] sm:$0xff]
        %v216 = vld [vmem:[%s178 + $0x50] sm:$0xff]
        %v217 = vld [vmem:[%s178 + $0x58] sm:$0xff]
        %v218 = vld [vmem:[%s178 + $0x60] sm:$0xff]
        %v219 = vld [vmem:[%s178 + $0x68] sm:$0xff]
        %v220 = vld [vmem:[%s178 + $0x70] sm:$0xff]
        %v221 = vld [vmem:[%s178 + $0x78] sm:$0xff]
        %v222 = vld [vmem:[%s178 + $0x80] sm:$0xff]
        %v223 = vld [vmem:[%s178 + $0x88] sm:$0xff]
        %v224 = vld [vmem:[%s178 + $0x90] sm:$0xff]
        %v225 = vld [vmem:[%s178 + $0x98] sm:$0xff]
        %v246 = vunpack.c.l.b16 %v206
        %v247 = vunpack.c.h.b16 %v206
        %v248 = vunpack.c.l.b16 %v207
        %v249 = vunpack.c.h.b16 %v207
        %v250 = vunpack.c.l.b16 %v208
        %v251 = vunpack.c.h.b16 %v208
        %v252 = vunpack.c.l.b16 %v209
        %v253 = vunpack.c.h.b16 %v209
        %v254 = vunpack.c.l.b16 %v210
        %v255 = vunpack.c.h.b16 %v210
        %v256 = vunpack.c.l.b16 %v211
        %v257 = vunpack.c.h.b16 %v211
        %v258 = vunpack.c.l.b16 %v212
        %v259 = vunpack.c.h.b16 %v212
        %v260 = vunpack.c.l.b16 %v213
        %v261 = vunpack.c.h.b16 %v213
        %v262 = vunpack.c.l.b16 %v214
        %v263 = vunpack.c.h.b16 %v214
        %v264 = vunpack.c.l.b16 %v215
        %v265 = vunpack.c.h.b16 %v215
        %v266 = vunpack.c.l.b16 %v216
        %v267 = vunpack.c.h.b16 %v216
        %v268 = vunpack.c.l.b16 %v217
        %v269 = vunpack.c.h.b16 %v217
        %v270 = vunpack.c.l.b16 %v218
        %v271 = vunpack.c.h.b16 %v218
        %v272 = vunpack.c.l.b16 %v219
        %v273 = vunpack.c.h.b16 %v219
        %v274 = vunpack.c.l.b16 %v220
        %v275 = vunpack.c.h.b16 %v220
        %v276 = vunpack.c.l.b16 %v221
        %v277 = vunpack.c.h.b16 %v221
        %v278 = vunpack.c.l.b16 %v222
        %v279 = vunpack.c.h.b16 %v222
        %v280 = vunpack.c.l.b16 %v223
        %v281 = vunpack.c.h.b16 %v223
        %v282 = vunpack.c.l.b16 %v224
        %v283 = vunpack.c.h.b16 %v224
        %v284 = vunpack.c.l.b16 %v225
        %v285 = vunpack.c.h.b16 %v225
        %v286 = vpack.c.b16 %v266, %v246
        %v287 = vpack.c.b16 %v267, %v247
        %v288 = vpack.c.b16 %v268, %v248
        %v289 = vpack.c.b16 %v269, %v249
        %v290 = vpack.c.b16 %v270, %v250
        %v291 = vpack.c.b16 %v271, %v251
        %v292 = vpack.c.b16 %v272, %v252
        %v293 = vpack.c.b16 %v273, %v253
        %v294 = vpack.c.b16 %v274, %v254
        %v295 = vpack.c.b16 %v275, %v255
        %v296 = vpack.c.b16 %v276, %v256
        %v297 = vpack.c.b16 %v277, %v257
        %v298 = vpack.c.b16 %v278, %v258
        %v299 = vpack.c.b16 %v279, %v259
        %v300 = vpack.c.b16 %v280, %v260
        %v301 = vpack.c.b16 %v281, %v261
        %v302 = vpack.c.b16 %v282, %v262
        %v303 = vpack.c.b16 %v283, %v263
        %v304 = vpack.c.b16 %v284, %v264
        %v305 = vpack.c.b16 %v285, %v265
        %vm326 = vcmask 130048
        %v328 = vsel %vm326, %v205, 0
        %330 = vmatpush.bf16.msra.mxu0 0
        %331 = vmatpush.bf16.msra.mxu0 0
        %332 = vmatpush.bf16.msra.mxu0 0
        %333 = vmatpush.bf16.msra.mxu0 0
        %334 = vmatpush.bf16.msra.mxu0 0
        %335 = vmatpush.bf16.msra.mxu0 0
        %336 = vmatpush.bf16.msra.mxu0 0
        %337 = vmatpush.bf16.msra.mxu0 %v286
        %338 = vmatmul.bf16.gmra.mxu0 %v328
        %v339 = vpop.f32.mrf.mxu0
        %v340 = vadd.f32 0.0, %v339
        %v341 = vpop.f32.mrf.mxu0
        %342 = vdwg.mxu0
        %343 = vmatpush.bf16.msra.mxu0 0
        %344 = vmatpush.bf16.msra.mxu0 0
        %345 = vmatpush.bf16.msra.mxu0 0
        %346 = vmatpush.bf16.msra.mxu0 0
        %347 = vmatpush.bf16.msra.mxu0 0
        %348 = vmatpush.bf16.msra.mxu0 0
        %349 = vmatpush.bf16.msra.mxu0 0
        %350 = vmatpush.bf16.msra.mxu0 %v287
        %351 = vmatmul.bf16.gmra.mxu0 %v328
        %v352 = vpop.f32.mrf.mxu0
        %v353 = vadd.f32 0.0, %v352
        %v354 = vpop.f32.mrf.mxu0
        %355 = vdwg.mxu0
        %356 = vmatpush.bf16.msra.mxu0 0
        %357 = vmatpush.bf16.msra.mxu0 0
        %358 = vmatpush.bf16.msra.mxu0 0
        %359 = vmatpush.bf16.msra.mxu0 0
        %360 = vmatpush.bf16.msra.mxu0 0
        %361 = vmatpush.bf16.msra.mxu0 0
        %362 = vmatpush.bf16.msra.mxu0 0
        %363 = vmatpush.bf16.msra.mxu0 %v288
        %364 = vmatmul.bf16.gmra.mxu0 %v328
        %v365 = vpop.f32.mrf.mxu0
        %v366 = vadd.f32 0.0, %v365
        %v367 = vpop.f32.mrf.mxu0
        %368 = vdwg.mxu0
        %369 = vmatpush.bf16.msra.mxu0 0
        %370 = vmatpush.bf16.msra.mxu0 0
        %371 = vmatpush.bf16.msra.mxu0 0
        %372 = vmatpush.bf16.msra.mxu0 0
        %373 = vmatpush.bf16.msra.mxu0 0
        %374 = vmatpush.bf16.msra.mxu0 0
        %375 = vmatpush.bf16.msra.mxu0 0
        %376 = vmatpush.bf16.msra.mxu0 %v289
        %377 = vmatmul.bf16.gmra.mxu0 %v328
        %v378 = vpop.f32.mrf.mxu0
        %v379 = vadd.f32 0.0, %v378
        %v380 = vpop.f32.mrf.mxu0
        %381 = vdwg.mxu0
        %382 = vmatpush.bf16.msra.mxu0 0
        %383 = vmatpush.bf16.msra.mxu0 0
        %384 = vmatpush.bf16.msra.mxu0 0
        %385 = vmatpush.bf16.msra.mxu0 0
        %386 = vmatpush.bf16.msra.mxu0 0
        %387 = vmatpush.bf16.msra.mxu0 0
        %388 = vmatpush.bf16.msra.mxu0 0
        %389 = vmatpush.bf16.msra.mxu0 %v290
        %390 = vmatmul.bf16.gmra.mxu0 %v328
        %v391 = vpop.f32.mrf.mxu0
        %v392 = vadd.f32 0.0, %v391
        %v393 = vpop.f32.mrf.mxu0
        %394 = vdwg.mxu0
        %395 = vmatpush.bf16.msra.mxu0 0
        %396 = vmatpush.bf16.msra.mxu0 0
        %397 = vmatpush.bf16.msra.mxu0 0
        %398 = vmatpush.bf16.msra.mxu0 0
        %399 = vmatpush.bf16.msra.mxu0 0
        %400 = vmatpush.bf16.msra.mxu0 0
        %401 = vmatpush.bf16.msra.mxu0 0
        %402 = vmatpush.bf16.msra.mxu0 %v291
        %403 = vmatmul.bf16.gmra.mxu0 %v328
        %v404 = vpop.f32.mrf.mxu0
        %v405 = vadd.f32 0.0, %v404
        %v406 = vpop.f32.mrf.mxu0
        %407 = vdwg.mxu0
        %408 = vmatpush.bf16.msra.mxu0 0
        %409 = vmatpush.bf16.msra.mxu0 0
        %410 = vmatpush.bf16.msra.mxu0 0
        %411 = vmatpush.bf16.msra.mxu0 0
        %412 = vmatpush.bf16.msra.mxu0 0
        %413 = vmatpush.bf16.msra.mxu0 0
        %414 = vmatpush.bf16.msra.mxu0 0
        %415 = vmatpush.bf16.msra.mxu0 %v292
        %416 = vmatmul.bf16.gmra.mxu0 %v328
        %v417 = vpop.f32.mrf.mxu0
        %v418 = vadd.f32 0.0, %v417
        %v419 = vpop.f32.mrf.mxu0
        %420 = vdwg.mxu0
        %421 = vmatpush.bf16.msra.mxu0 0
        %422 = vmatpush.bf16.msra.mxu0 0
        %423 = vmatpush.bf16.msra.mxu0 0
        %424 = vmatpush.bf16.msra.mxu0 0
        %425 = vmatpush.bf16.msra.mxu0 0
        %426 = vmatpush.bf16.msra.mxu0 0
        %427 = vmatpush.bf16.msra.mxu0 0
        %428 = vmatpush.bf16.msra.mxu0 %v293
        %429 = vmatmul.bf16.gmra.mxu0 %v328
        %v430 = vpop.f32.mrf.mxu0
        %v431 = vadd.f32 0.0, %v430
        %v432 = vpop.f32.mrf.mxu0
        %433 = vdwg.mxu0
        %434 = vmatpush.bf16.msra.mxu0 0
        %435 = vmatpush.bf16.msra.mxu0 0
        %436 = vmatpush.bf16.msra.mxu0 0
        %437 = vmatpush.bf16.msra.mxu0 0
        %438 = vmatpush.bf16.msra.mxu0 0
        %439 = vmatpush.bf16.msra.mxu0 0
        %440 = vmatpush.bf16.msra.mxu0 0
        %441 = vmatpush.bf16.msra.mxu0 %v294
        %442 = vmatmul.bf16.gmra.mxu0 %v328
        %v443 = vpop.f32.mrf.mxu0
        %v444 = vadd.f32 0.0, %v443
        %v445 = vpop.f32.mrf.mxu0
        %446 = vdwg.mxu0
        %447 = vmatpush.bf16.msra.mxu0 0
        %448 = vmatpush.bf16.msra.mxu0 0
        %449 = vmatpush.bf16.msra.mxu0 0
        %450 = vmatpush.bf16.msra.mxu0 0
        %451 = vmatpush.bf16.msra.mxu0 0
        %452 = vmatpush.bf16.msra.mxu0 0
        %453 = vmatpush.bf16.msra.mxu0 0
        %454 = vmatpush.bf16.msra.mxu0 %v295
        %455 = vmatmul.bf16.gmra.mxu0 %v328
        %v456 = vpop.f32.mrf.mxu0
        %v457 = vadd.f32 0.0, %v456
        %v458 = vpop.f32.mrf.mxu0
        %459 = vdwg.mxu0
        %460 = vmatpush.bf16.msra.mxu0 0
        %461 = vmatpush.bf16.msra.mxu0 0
        %462 = vmatpush.bf16.msra.mxu0 0
        %463 = vmatpush.bf16.msra.mxu0 0
        %464 = vmatpush.bf16.msra.mxu0 0
        %465 = vmatpush.bf16.msra.mxu0 0
        %466 = vmatpush.bf16.msra.mxu0 0
        %467 = vmatpush.bf16.msra.mxu0 %v296
        %468 = vmatmul.bf16.gmra.mxu0 %v328
        %v469 = vpop.f32.mrf.mxu0
        %v470 = vadd.f32 0.0, %v469
        %v471 = vpop.f32.mrf.mxu0
        %472 = vdwg.mxu0
        %473 = vmatpush.bf16.msra.mxu0 0
        %474 = vmatpush.bf16.msra.mxu0 0
        %475 = vmatpush.bf16.msra.mxu0 0
        %476 = vmatpush.bf16.msra.mxu0 0
        %477 = vmatpush.bf16.msra.mxu0 0
        %478 = vmatpush.bf16.msra.mxu0 0
        %479 = vmatpush.bf16.msra.mxu0 0
        %480 = vmatpush.bf16.msra.mxu0 %v297
        %481 = vmatmul.bf16.gmra.mxu0 %v328
        %v482 = vpop.f32.mrf.mxu0
        %v483 = vadd.f32 0.0, %v482
        %v484 = vpop.f32.mrf.mxu0
        %485 = vdwg.mxu0
        %486 = vmatpush.bf16.msra.mxu0 0
        %487 = vmatpush.bf16.msra.mxu0 0
        %488 = vmatpush.bf16.msra.mxu0 0
        %489 = vmatpush.bf16.msra.mxu0 0
        %490 = vmatpush.bf16.msra.mxu0 0
        %491 = vmatpush.bf16.msra.mxu0 0
        %492 = vmatpush.bf16.msra.mxu0 0
        %493 = vmatpush.bf16.msra.mxu0 %v298
        %494 = vmatmul.bf16.gmra.mxu0 %v328
        %v495 = vpop.f32.mrf.mxu0
        %v496 = vadd.f32 0.0, %v495
        %v497 = vpop.f32.mrf.mxu0
        %498 = vdwg.mxu0
        %499 = vmatpush.bf16.msra.mxu0 0
        %500 = vmatpush.bf16.msra.mxu0 0
        %501 = vmatpush.bf16.msra.mxu0 0
        %502 = vmatpush.bf16.msra.mxu0 0
        %503 = vmatpush.bf16.msra.mxu0 0
        %504 = vmatpush.bf16.msra.mxu0 0
        %505 = vmatpush.bf16.msra.mxu0 0
        %506 = vmatpush.bf16.msra.mxu0 %v299
        %507 = vmatmul.bf16.gmra.mxu0 %v328
        %v508 = vpop.f32.mrf.mxu0
        %v509 = vadd.f32 0.0, %v508
        %v510 = vpop.f32.mrf.mxu0
        %511 = vdwg.mxu0
        %512 = vmatpush.bf16.msra.mxu0 0
        %513 = vmatpush.bf16.msra.mxu0 0
        %514 = vmatpush.bf16.msra.mxu0 0
        %515 = vmatpush.bf16.msra.mxu0 0
        %516 = vmatpush.bf16.msra.mxu0 0
        %517 = vmatpush.bf16.msra.mxu0 0
        %518 = vmatpush.bf16.msra.mxu0 0
        %519 = vmatpush.bf16.msra.mxu0 %v300
        %520 = vmatmul.bf16.gmra.mxu0 %v328
        %v521 = vpop.f32.mrf.mxu0
        %v522 = vadd.f32 0.0, %v521
        %v523 = vpop.f32.mrf.mxu0
        %524 = vdwg.mxu0
        %525 = vmatpush.bf16.msra.mxu0 0
        %526 = vmatpush.bf16.msra.mxu0 0
        %527 = vmatpush.bf16.msra.mxu0 0
        %528 = vmatpush.bf16.msra.mxu0 0
        %529 = vmatpush.bf16.msra.mxu0 0
        %530 = vmatpush.bf16.msra.mxu0 0
        %531 = vmatpush.bf16.msra.mxu0 0
        %532 = vmatpush.bf16.msra.mxu0 %v301
        %533 = vmatmul.bf16.gmra.mxu0 %v328
        %v534 = vpop.f32.mrf.mxu0
        %v535 = vadd.f32 0.0, %v534
        %v536 = vpop.f32.mrf.mxu0
        %537 = vdwg.mxu0
        %538 = vmatpush.bf16.msra.mxu0 0
        %539 = vmatpush.bf16.msra.mxu0 0
        %540 = vmatpush.bf16.msra.mxu0 0
        %541 = vmatpush.bf16.msra.mxu0 0
        %542 = vmatpush.bf16.msra.mxu0 0
        %543 = vmatpush.bf16.msra.mxu0 0
        %544 = vmatpush.bf16.msra.mxu0 0
        %545 = vmatpush.bf16.msra.mxu0 %v302
        %546 = vmatmul.bf16.gmra.mxu0 %v328
        %v547 = vpop.f32.mrf.mxu0
        %v548 = vadd.f32 0.0, %v547
        %v549 = vpop.f32.mrf.mxu0
        %550 = vdwg.mxu0
        %551 = vmatpush.bf16.msra.mxu0 0
        %552 = vmatpush.bf16.msra.mxu0 0
        %553 = vmatpush.bf16.msra.mxu0 0
        %554 = vmatpush.bf16.msra.mxu0 0
        %555 = vmatpush.bf16.msra.mxu0 0
        %556 = vmatpush.bf16.msra.mxu0 0
        %557 = vmatpush.bf16.msra.mxu0 0
        %558 = vmatpush.bf16.msra.mxu0 %v303
        %559 = vmatmul.bf16.gmra.mxu0 %v328
        %v560 = vpop.f32.mrf.mxu0
        %v561 = vadd.f32 0.0, %v560
        %v562 = vpop.f32.mrf.mxu0
        %563 = vdwg.mxu0
        %564 = vmatpush.bf16.msra.mxu0 0
        %565 = vmatpush.bf16.msra.mxu0 0
        %566 = vmatpush.bf16.msra.mxu0 0
        %567 = vmatpush.bf16.msra.mxu0 0
        %568 = vmatpush.bf16.msra.mxu0 0
        %569 = vmatpush.bf16.msra.mxu0 0
        %570 = vmatpush.bf16.msra.mxu0 0
        %571 = vmatpush.bf16.msra.mxu0 %v304
        %572 = vmatmul.bf16.gmra.mxu0 %v328
        %v573 = vpop.f32.mrf.mxu0
        %v574 = vadd.f32 0.0, %v573
        %v575 = vpop.f32.mrf.mxu0
        %576 = vdwg.mxu0
        %577 = vmatpush.bf16.msra.mxu0 0
        %578 = vmatpush.bf16.msra.mxu0 0
        %579 = vmatpush.bf16.msra.mxu0 0
        %580 = vmatpush.bf16.msra.mxu0 0
        %581 = vmatpush.bf16.msra.mxu0 0
        %582 = vmatpush.bf16.msra.mxu0 0
        %583 = vmatpush.bf16.msra.mxu0 0
        %584 = vmatpush.bf16.msra.mxu0 %v305
        %585 = vmatmul.bf16.gmra.mxu0 %v328
        %v586 = vpop.f32.mrf.mxu0
        %v587 = vadd.f32 0.0, %v586
        %v588 = vpop.f32.mrf.mxu0
        %589 = vdwg.mxu0
        %v610 = vrot.slane %v353, 6
        %v611 = vrot.slane %v366, 4
        %v612 = vrot.slane %v379, 2
        %v613 = vrot.slane %v405, 6
        %v614 = vrot.slane %v418, 4
        %v615 = vrot.slane %v431, 2
        %v616 = vrot.slane %v457, 6
        %v617 = vrot.slane %v470, 4
        %v618 = vrot.slane %v483, 2
        %v619 = vrot.slane %v509, 6
        %v620 = vrot.slane %v522, 4
        %v621 = vrot.slane %v535, 2
        %v622 = vrot.slane %v561, 6
        %v623 = vrot.slane %v574, 4
        %v624 = vrot.slane %v587, 2
        %vm625 = vcmask 1041408
        %v626 = vsel %vm625, %v340, %v610
        %vm627 = vcmask 1045508
        %v628 = vsel %vm627, %v611, %v612
        %vm629 = vcmask 1043456
        %v630 = vsel %vm629, %v626, %v628
        %v631 = vsel %vm625, %v392, %v613
        %v632 = vsel %vm627, %v614, %v615
        %v633 = vsel %vm629, %v631, %v632
        %v634 = vsel %vm625, %v444, %v616
        %v635 = vsel %vm627, %v617, %v618
        %v636 = vsel %vm629, %v634, %v635
        %v637 = vsel %vm625, %v496, %v619
        %v638 = vsel %vm627, %v620, %v621
        %v639 = vsel %vm629, %v637, %v638
        %v640 = vsel %vm625, %v548, %v622
        %v641 = vsel %vm627, %v623, %v624
        %v642 = vsel %vm629, %v640, %v641
        %648 = vst [vmem:[%s202] sm:$0xff] %v630
        %649 = vst [vmem:[%s202 + $0x8] sm:$0xff] %v633
        %650 = vst [vmem:[%s202 + $0x10] sm:$0xff] %v636
        %651 = vst [vmem:[%s202 + $0x18] sm:$0xff] %v639
        %652 = vst [vmem:[%s202 + $0x20] sm:$0xff] %v642
        %s653 = smul.u32 20, %s13
        %p654 = scmp.lt.s32.totalorder %s653, 39
        %s655 = scalar_select %p654, %s653, 39
        %s656 = smul.addr %s655, 2
        %s657 = scalar_lea.vmem %s2, %s656
        // Predicated region
        $region52: #{ht_forward.1} parent=46 // pred_check
          %p658 = pneg %p78
        $region53: #{ht_forward.1} parent=46 // pred_check_branch
          %660 = sbr.rel (%p658) target = $region55
        $region54: #{ht_forward.1} parent=46 // pred_region
          %s661 = smul.u32 20, %s13
        $region55: #{ht_forward.1} parent=46 // pred_fallthru
          _
      $region47: #{ht_forward.1} parent=5 // pred_fallthru
        _
      %p662 = scmp.le.s32.totalorder 2, %s8
      // Predicated region
      $region56: #{ht_forward.1} parent=5 // pred_check
        %p663 = pneg %p662
      $region57: #{ht_forward.1} parent=5 // pred_check_branch
        %665 = sbr.rel (%p663) target = $region59
      $region58: #{ht_forward.1} parent=5 // pred_region
        %s666 = ssub.s32 %s8, 2
        // Predicated region
        $region60: #{ht_forward.1} parent=58 // pred_check
          %p667 = pneg %p84
        $region61: #{ht_forward.1} parent=58 // pred_check_branch
          %669 = sbr.rel (%p667) target = $region63
        $region62: #{ht_forward.1} parent=58 // pred_region
          %s670 = smul.u32 20, %s14
          %p671 = scmp.lt.s32.totalorder %s670, 39
          %s672 = scalar_select %p671, %s670, 39
          %s673 = smul.addr %s672, 2
          %s674 = scalar_lea.vmem %s2, %s673
        $region63: #{ht_forward.1} parent=58 // pred_fallthru
          _
      $region59: #{ht_forward.1} parent=5 // pred_fallthru
        _
    $region6: #{ht_forward.1} parent=1 // loop_footer
      %s12 = sadd.s32 1, %s8
    $region7: #{ht_forward.1} parent=1 // loop_footer_branch
      %7 = sbr.rel target = $region3
    $region8: #{ht_forward.1} parent=1 // loop_exit
      _

</llo_original>
